<compile_context>
chip_gen: v5e
topology: v5e:2x2
jax: 0.10.0
libtpu: 0.0.40
codegen_flags: <defaults>
</compile_context>

<pallas_src>
import math

import jax
import jax.numpy as jnp
from jax.experimental import pallas as pl
from jax.experimental.pallas import tpu as pltpu


def _dytanh_kernel(x_ref, p_ref, o_ref):
    # x_ref: (TR, L) tile of the row-flattened, lane-packed input.
    # p_ref: (3, L) fused parameters, rows = [scale, alpha, shift]; constant
    #        block index -> stays resident in VMEM across all grid steps.
    x = x_ref[...].astype(jnp.float32)
    scale = p_ref[0:1, :]
    alpha = p_ref[1:2, :]
    shift = p_ref[2:3, :]
    o_ref[...] = (scale * jnp.tanh(alpha * x) + shift).astype(o_ref.dtype)


def _vmem_plan():
    """Generation-aware (vmem_limit_bytes, target bytes per pipelined buffer)."""
    try:
        cap = int(pltpu.get_tpu_info().vmem_capacity_bytes)
    except Exception:
        cap = 64 << 20  # conservative default if the query is unavailable
    if cap >= (96 << 20):
        # v5e / v6e: 128 MiB physical VMEM.
        return 64 << 20, 8 << 20
    # v7x: 64 MiB physical VMEM (or unknown/small) -> stay well under it.
    return 40 << 20, 4 << 20


def _choose_tile_rows(total_rows, lane_width, itemsize, target_bytes):
    """Sublane-aligned row-tile size; prefers >= 2 grid blocks (v7x megacore)."""
    tr = target_bytes // max(1, lane_width * itemsize)
    tr = max(8, (tr // 8) * 8)
    if tr >= total_rows:
        # Split into (at least) two blocks so both v7x TensorCores get work,
        # as long as the split stays sublane-aligned.
        half = max(8, ((total_rows + 1) // 2 + 7) // 8 * 8)
        if half < total_rows:
            return half
        return total_rows  # too small to split legally -> one full-extent block
    return tr


def dytanh_instance(x, scale, shift, alpha):
    """x: (B, S, D); scale/shift/alpha: (1, 1, D). Returns (B, S, D)."""
    B, S, D = x.shape
    out_dtype = x.dtype
    R = B * S

    # Fuse the three (1,1,D) parameters into one (3, D) f32 slab.
    p = jnp.concatenate(
        [scale.reshape(1, D), alpha.reshape(1, D), shift.reshape(1, D)], axis=0
    ).astype(jnp.float32)

    x_flat = x.reshape(R, D)
    pad_rows = 0
    pad_chan = 0

    if D % 128 == 0:
        # Already lane-dense.
        rows, lane = R, D
        x2 = x_flat
    else:
        L = math.lcm(D, 128)
        if L <= 512:
            # Pack k rows into one lane-dense row of width L; lane j maps to
            # channel j % D, so tile the param slab k times along lanes.
            k = L // D
            R_pad = ((R + k - 1) // k) * k
            pad_rows = R_pad - R
            if pad_rows:
                x_flat = jnp.pad(x_flat, ((0, pad_rows), (0, 0)))
            rows, lane = R_pad // k, L
            x2 = x_flat.reshape(rows, lane)
            p = jnp.tile(p, (1, k))
        else:
            # Awkward D (e.g. 100): zero-pad the channel dim to the next
            # multiple of 128; padded channels have zero params -> sliced away.
            D_pad = ((D + 127) // 128) * 128
            pad_chan = D_pad - D
            x2 = jnp.pad(x_flat, ((0, 0), (0, pad_chan)))
            p = jnp.pad(p, ((0, 0), (0, pad_chan)))
            rows, lane = R, D_pad

    vmem_limit_bytes, target_bytes = _vmem_plan()
    tr = _choose_tile_rows(rows, lane, x2.dtype.itemsize, target_bytes)
    grid = (pl.cdiv(rows, tr),)

    out2 = pl.pallas_call(
        _dytanh_kernel,
        out_shape=jax.ShapeDtypeStruct((rows, lane), out_dtype),
        grid_spec=pl.GridSpec(
            grid=grid,
            in_specs=[
                pl.BlockSpec((tr, lane), lambda i: (i, 0)),
                pl.BlockSpec((3, lane), lambda i: (0, 0)),
            ],
            out_specs=pl.BlockSpec((tr, lane), lambda i: (i, 0)),
        ),
        compiler_params=pltpu.CompilerParams(
            dimension_semantics=("parallel",),
            vmem_limit_bytes=vmem_limit_bytes,
        ),
    )(x2, p)

    # Undo the lane packing / padding and restore (B, S, D).
    out_flat = out2.reshape(-1, D) if pad_chan == 0 else out2[:, :D]
    if pad_rows:
        out_flat = out_flat[:R]
    if pad_chan:
        out_flat = out_flat[:R]
    return out_flat.reshape(B, S, D)


def _reference(x, scale, shift, alpha):
    return scale * jnp.tanh(alpha * x) + shift


if __name__ == "__main__":
    key = jax.random.PRNGKey(0)

    # Primary test: shapes consistent with the module (batch=2, seq=8, embed_dim=32).
    B, S, D = 2, 8, 32
    mean, std = 0.1, 0.001
    kx, ks, ksh, ka, kx2, ks2, ksh2, ka2 = jax.random.split(key, 8)

    x = jax.random.normal(kx, (B, S, D), dtype=jnp.float32)
    scale = jax.random.normal(ks, (1, 1, D), dtype=jnp.float32) * std + mean
    shift = jax.random.normal(ksh, (1, 1, D), dtype=jnp.float32) * std + mean
    alpha = jax.random.normal(ka, (1, 1, D), dtype=jnp.float32) * std + mean

    out = jax.block_until_ready(dytanh_instance(x, scale, shift, alpha))
    ref = _reference(x, scale, shift, alpha)
    assert out.shape == (B, S, D)
    assert jnp.allclose(out, ref, atol=1e-6, rtol=1e-6), "mismatch vs reference (D=32)"

    # Secondary sanity check: awkward embed_dim exercising the lcm-packing path.
    D2 = 48
    x2 = jax.random.normal(kx2, (B, S, D2), dtype=jnp.float32)
    scale2 = jax.random.normal(ks2, (1, 1, D2), dtype=jnp.float32) * std + mean
    shift2 = jax.random.normal(ksh2, (1, 1, D2), dtype=jnp.float32) * std + mean
    alpha2 = jax.random.normal(ka2, (1, 1, D2), dtype=jnp.float32) * std + mean

    out2 = jax.block_until_ready(dytanh_instance(x2, scale2, shift2, alpha2))
    ref2 = _reference(x2, scale2, shift2, alpha2)
    assert out2.shape == (B, S, D2)
    assert jnp.allclose(out2, ref2, atol=1e-6, rtol=1e-6), "mismatch vs reference (D=48)"

    print("KERNEL_OK")
</pallas_src>

<mosaic_0001>
module attributes {stable_mosaic.version = 11 : i64} {
  func.func @_dytanh_kernel(%arg0: i32, %arg1: memref<4x128xf32, #tpu.memory_space<vmem>>, %arg2: memref<3x128xf32, #tpu.memory_space<vmem>>, %arg3: memref<4x128xf32, #tpu.memory_space<vmem>>) attributes {dimension_semantics = [#tpu.dimension_semantics<parallel>], iteration_bounds = array<i64: 1>, scalar_prefetch = 0 : i64, scratch_operands = 0 : i64, tpu.core_type = #tpu.core_type<tc>, window_params = [{transform_indices = @transform_0, window_bounds = array<i64: 4, 128>}, {pipeline_mode = #tpu.pipeline_mode<synchronous>, transform_indices = @transform_1, window_bounds = array<i64: 3, 128>}, {transform_indices = @transform_2, window_bounds = array<i64: 4, 128>}]} {
    %c0 = arith.constant 0 : index
    %c0_0 = arith.constant 0 : index
    %0 = vector.load %arg1[%c0, %c0_0] : memref<4x128xf32, #tpu.memory_space<vmem>>, vector<4x128xf32>
    %c0_1 = arith.constant 0 : index
    %c0_2 = arith.constant 0 : index
    %1 = vector.load %arg2[%c0_1, %c0_2] : memref<3x128xf32, #tpu.memory_space<vmem>>, vector<1x128xf32>
    %c1 = arith.constant 1 : index
    %c0_3 = arith.constant 0 : index
    %2 = vector.load %arg2[%c1, %c0_3] : memref<3x128xf32, #tpu.memory_space<vmem>>, vector<1x128xf32>
    %c2 = arith.constant 2 : index
    %c0_4 = arith.constant 0 : index
    %3 = vector.load %arg2[%c2, %c0_4] : memref<3x128xf32, #tpu.memory_space<vmem>>, vector<1x128xf32>
    %4 = vector.broadcast %2 : vector<1x128xf32> to vector<4x128xf32>
    %5 = arith.mulf %4, %0 : vector<4x128xf32>
    %6 = math.tanh %5 : vector<4x128xf32>
    %7 = vector.broadcast %1 : vector<1x128xf32> to vector<4x128xf32>
    %8 = arith.mulf %7, %6 : vector<4x128xf32>
    %9 = vector.broadcast %3 : vector<1x128xf32> to vector<4x128xf32>
    %10 = arith.addf %8, %9 : vector<4x128xf32>
    %c0_5 = arith.constant 0 : index
    %c0_6 = arith.constant 0 : index
    %11 = vector.load %arg3[%c0_5, %c0_6] : memref<4x128xf32, #tpu.memory_space<vmem>>, vector<4x128xf32>
    tpu.vector_store %arg3[%c0_5, %c0_6], %10 {strides = array<i32>} : memref<4x128xf32, #tpu.memory_space<vmem>>, vector<4x128xf32>,
    return
  }
  func.func @transform_0(%arg0: i32) -> (i32, i32) {
    %c0_i32 = arith.constant 0 : i32
    %c0_i32_0 = arith.constant 0 : i32
    return %arg0, %c0_i32 : i32, i32
  }
  func.func @transform_1(%arg0: i32) -> (i32, i32) {
    %c0_i32 = arith.constant 0 : i32
    %c0_i32_0 = arith.constant 0 : i32
    %c0_i32_1 = arith.constant 0 : i32
    return %c0_i32, %c0_i32_0 : i32, i32
  }
  func.func @transform_2(%arg0: i32) -> (i32, i32) {
    %c0_i32 = arith.constant 0 : i32
    %c0_i32_0 = arith.constant 0 : i32
    return %arg0, %c0_i32 : i32, i32
  }
}

</mosaic_0001>

<llo_original>
// kernel: tpu_custom_call.1
$region0: #{tpu_custom_call.1}
  #allocation0 [shape = 'u32[]', space=smem, size = 0x4, offset = 0x4, fixed_abs, tag = 'smem constant byte address 0x4 - core index']
  #allocation1 [shape = 'u32[72,128]{1,0:T(1,128)}', space=vmem, size = 0x9000, scoped, tag = 'internal scratch']
  %s0 = inlined_call_operand.hbm [shape: f32[4,128], index: 0, kind: input, shape index: {}]
  %s1 = inlined_call_operand.hbm [shape: f32[3,128], index: 1, kind: input, shape index: {}]
  %s2 = inlined_call_operand.hbm [shape: f32[4,128], index: 2, kind: output, shape index: {}]
  %s3 = sld [smem:[#allocation0]]
  $region26: #{tpu_custom_call.1} parent=0
    _
  %s5 = ssub.s32 1, %s3
  %s6 = scalar_select 0, %s5, %s3
  $region1: #{tpu_custom_call.1} parent=0
    #allocation2 [shape = 'u8[2048]{0}', space=vmem, size = 0x800, scoped, tag = 'input window, operand 0, single buffered']
    #allocation3 [shape = 's32[1]{0}', space=sflag, size = 0x4, scoped, tag = 'scoped memory for tpu_custom_call.1']
    #allocation4 [shape = 's32[1]{0}', space=sflag, size = 0x4, scoped, tag = 'scoped memory for tpu_custom_call.1']
    #allocation5 [shape = 'u8[2048]{0}', space=vmem, size = 0x800, scoped, tag = 'input window, operand 1, single buffered']
    #allocation6 [shape = 's32[1]{0}', space=sflag, size = 0x4, scoped, tag = 'scoped memory for tpu_custom_call.1']
    #allocation7 [shape = 'u8[2048]{0}', space=vmem, size = 0x800, scoped, tag = 'output window, operand 0, single buffered']
    %7 = vsyncpa [#allocation3], 0
    %8 = vsyncpa [#allocation6], 0
    %9 = vsyncpa [#allocation4], 0
    // Predicated region
    $region2: #{tpu_custom_call.1} parent=1 // pred_check
      _
    $region3: #{tpu_custom_call.1} parent=1 // pred_check_branch
      %11 = sbr.rel (0) target = $region5
    $region4: #{tpu_custom_call.1} parent=1 // pred_region
      %13 = vsyncadd [#allocation3], 0
      %s15 = sshll.u32 %s0, 4
      %s16 = int_to_ptr.hbm [resolvable:$true] %s15
      %s17 = sshll.u32 [#allocation2], 4
      %s18 = int_to_ptr.vmem [resolvable:$true] %s17
      %20 = dma.hbm_to_vmem [thread:$0]  %s16, 64, %s18, [#allocation3]
    $region5: #{tpu_custom_call.1} parent=1 // pred_fallthru
      _
    // Predicated region
    $region6: #{tpu_custom_call.1} parent=1 // pred_check
      _
    $region7: #{tpu_custom_call.1} parent=1 // pred_check_branch
      %22 = sbr.rel (0) target = $region9
    $region8: #{tpu_custom_call.1} parent=1 // pred_region
      %24 = vsyncadd [#allocation6], 0
      %s26 = sshll.u32 %s1, 4
      %s27 = int_to_ptr.hbm [resolvable:$true] %s26
      %s28 = sshll.u32 [#allocation5], 4
      %s29 = int_to_ptr.vmem [resolvable:$true] %s28
      %31 = dma.hbm_to_vmem [thread:$0]  %s27, 64, %s29, [#allocation6]
    $region9: #{tpu_custom_call.1} parent=1 // pred_fallthru
      _
    // Predicated region
    $region10: #{tpu_custom_call.1} parent=1 // pred_check
      _
    $region11: #{tpu_custom_call.1} parent=1 // pred_check_branch
      %33 = sbr.rel (0) target = $region13
    $region12: #{tpu_custom_call.1} parent=1 // pred_region
      %35 = dma.done [#allocation3], 64
    $region13: #{tpu_custom_call.1} parent=1 // pred_fallthru
      _
    // Predicated region
    $region14: #{tpu_custom_call.1} parent=1 // pred_check
      _
    $region15: #{tpu_custom_call.1} parent=1 // pred_check_branch
      %37 = sbr.rel (0) target = $region17
    $region16: #{tpu_custom_call.1} parent=1 // pred_region
      %39 = dma.done [#allocation6], 64
    $region17: #{tpu_custom_call.1} parent=1 // pred_fallthru
      _
    %v40 = vld [vmem:[#allocation2] sm:$0xf]
    %v41 = vld [vmem:[#allocation5] sm:$0x1]
    %v42 = vld [vmem:[#allocation5 + $0x1] sm:$0x1]
    %v43 = vld [vmem:[#allocation5 + $0x2] sm:$0x1]
    %v44 = vperm.slane %v42, 0
    %v45 = vmul.f32 %v44, %v40
    %v46 = vtanh.pop %v45
    %v47 = vperm.slane %v41, 0
    %v48 = vmul.f32 %v47, %v46
    %v49 = vperm.slane %v43, 0
    %v50 = vadd.f32 %v48, %v49
    %51 = vst [vmem:[#allocation7] sm:$0xf] %v50
    // Predicated region
    $region18: #{tpu_custom_call.1} parent=1 // pred_check
      _
    $region19: #{tpu_custom_call.1} parent=1 // pred_check_branch
      %53 = sbr.rel (0) target = $region21
    $region20: #{tpu_custom_call.1} parent=1 // pred_region
      %55 = vsyncadd [#allocation4], 0
      %s57 = sshll.u32 [#allocation7], 4
      %s58 = int_to_ptr.vmem [resolvable:$true] %s57
      %s59 = sshll.u32 %s2, 4
      %s60 = int_to_ptr.hbm [resolvable:$true] %s59
      %62 = dma.vmem_to_hbm [thread:$0]  %s58, 64, %s60, [#allocation4]
    $region21: #{tpu_custom_call.1} parent=1 // pred_fallthru
      _
    // Predicated region
    $region22: #{tpu_custom_call.1} parent=1 // pred_check
      _
    $region23: #{tpu_custom_call.1} parent=1 // pred_check_branch
      %64 = sbr.rel (0) target = $region25
    $region24: #{tpu_custom_call.1} parent=1 // pred_region
      %66 = dma.done [#allocation4], 64
    $region25: #{tpu_custom_call.1} parent=1 // pred_fallthru
      _
    %67 = vsyncpa [#allocation3], 1
    %68 = vsyncpa [#allocation6], 1
    %69 = vsyncpa [#allocation4], 1

</llo_original>
